<compile_context>
chip_gen: v7x
topology: tpu7x:2x2x1
jax: 0.10.0
libtpu: 0.0.40
codegen_flags: <defaults>
</compile_context>

<pallas_src>
import jax
import jax.numpy as jnp
from jax.experimental import pallas as pl
from jax.experimental.pallas import tpu as pltpu

_SQRT_2_OVER_PI = 0.7978845608028654
_GELU_COEF = 0.044715

# Resident bytes of double-buffered blocks per grid step (2 buffers x (inputs+out)).
# ~20 MiB resident -> ~10 MiB moved per step; f32 temporaries stay well under the
# explicit 48 MiB vmem limit (and under v7x's 64 MiB physical VMEM).
_VMEM_RESIDENT_BLOCK_BUDGET_BYTES = 20 * 1024 * 1024
_VMEM_LIMIT_BYTES = 48 * 1024 * 1024
_MAX_ROW_TILE = 4096
_MIN_GRID_STEPS = 4          # give the software pipeline something to overlap
_MAX_COL_TILE_LANES = 2048


def _cdiv(a, b):
    return (a + b - 1) // b


def _round_up(x, m):
    return ((x + m - 1) // m) * m


def _round_down(x, m):
    return (x // m) * m


def _supports_low_precision_gelu():
    """True only on chips with native bf16 VPU/EUP (v6e, v7x)."""
    try:
        kind = jax.devices()[0].device_kind.lower()
    except Exception:
        return False
    return any(tag in kind for tag in ("v6", "v7", "tpu7"))


def _gelu_tanh(y1, compute_dtype):
    """tanh-approx GELU (matches jax.nn.gelu(approximate=True)) in compute_dtype."""
    y = y1.astype(compute_dtype)
    inner = _SQRT_2_OVER_PI * (y + _GELU_COEF * y * y * y)
    return 0.5 * y * (1.0 + jnp.tanh(inner))


def _make_split_kernel(low_precision_gelu):
    # x1/x2: (TM, TH) column tiles of the two GLU halves; b1/b2: (1, TH); o: (TM, TH)
    def kernel(x1_ref, x2_ref, b1_ref, b2_ref, o_ref):
        y1 = x1_ref[...] + b1_ref[...]          # bias add in input dtype
        y2 = x2_ref[...] + b2_ref[...]
        gelu_dtype = y1.dtype if low_precision_gelu else jnp.float32
        g = _gelu_tanh(y1, gelu_dtype).astype(y2.dtype)
        o_ref[...] = (g * y2).astype(o_ref.dtype)

    return kernel


def _make_fullwidth_kernel(h, low_precision_gelu):
    # Fallback for small / non-128-aligned H. x: (TM, 2H), b: (1, 2H), o: (TM, H).
    # Slice the refs (views) before the add -> no (TM, 2H) intermediate.
    def kernel(x_ref, b_ref, o_ref):
        y1 = x_ref[:, :h] + b_ref[:, :h]
        y2 = x_ref[:, h:] + b_ref[:, h:]
        gelu_dtype = y1.dtype if low_precision_gelu else jnp.float32
        g = _gelu_tanh(y1, gelu_dtype).astype(y2.dtype)
        o_ref[...] = (g * y2).astype(o_ref.dtype)

    return kernel


def _pick_col_tile(h):
    """Largest multiple of 128 that divides H, capped at _MAX_COL_TILE_LANES."""
    units = h // 128
    cap_units = _MAX_COL_TILE_LANES // 128
    for t in range(min(units, cap_units), 0, -1):
        if units % t == 0:
            return t * 128
    return 128


def _pick_row_tile(resident_bytes_per_row, n_rows, n_col_tiles, row_mult):
    # resident_bytes_per_row = double-buffered block bytes for ONE row.
    tm = _round_down(
        _VMEM_RESIDENT_BLOCK_BUDGET_BYTES // max(resident_bytes_per_row, 1), row_mult
    )
    tm = max(row_mult, min(_MAX_ROW_TILE, tm))
    # Keep both v7x TensorCores busy (>=2 row tiles) and give the pipeline >= ~4
    # total grid steps, when n_rows allows it.
    min_row_tiles = max(2, _cdiv(_MIN_GRID_STEPS, max(n_col_tiles, 1)))
    tm_cap = _round_up(_cdiv(n_rows, min_row_tiles), row_mult)
    tm = min(tm, max(row_mult, tm_cap))
    # Never taller than the (sublane-rounded) row count.
    tm = min(tm, _round_up(n_rows, row_mult))
    return tm


def fused_bias_geglu(x, bias):
    """x: [..., 2H], bias: [2H] -> [..., H]  (forward of FuseBiasGeGLU)."""
    *lead, two_h = x.shape
    assert two_h % 2 == 0, "last dim must be even (2 * hidden)"
    assert bias.shape == (two_h,)
    h = two_h // 2

    n_rows = 1
    for d in lead:
        n_rows *= d
    x2d = x.reshape(n_rows, two_h)
    b2d = bias.reshape(1, two_h)

    dtype = jnp.dtype(x.dtype)
    itemsize = dtype.itemsize
    row_mult = max(8, 32 // itemsize)                    # 8 f32, 16 bf16, 32 int8
    low_prec_gelu = (itemsize < 4) and _supports_low_precision_gelu()

    if h % 128 == 0:
        # ---- main path: grid (feature tiles, row tiles), split GLU halves ----
        th = _pick_col_tile(h)
        n_col_tiles = h // th
        # per row (double-buffered): 2 x-half blocks + 1 out block
        tm = _pick_row_tile(2 * 3 * th * itemsize, n_rows, n_col_tiles, row_mult)
        n_row_tiles = _cdiv(n_rows, tm)
        grid = (n_col_tiles, n_row_tiles)                # rows innermost: bias block
                                                         # index constant -> DMA elided
        out = pl.pallas_call(
            _make_split_kernel(low_prec_gelu),
            out_shape=jax.ShapeDtypeStruct((n_rows, h), x.dtype),
            grid_spec=pltpu.PrefetchScalarGridSpec(
                num_scalar_prefetch=0,
                grid=grid,
                in_specs=[
                    # first GLU half: columns [j*TH, (j+1)*TH)
                    pl.BlockSpec((tm, th), lambda j, i: (i, j)),
                    # second GLU half: same array, column block shifted by H/TH
                    pl.BlockSpec((tm, th), lambda j, i: (i, j + n_col_tiles)),
                    pl.BlockSpec((1, th), lambda j, i: (0, j)),
                    pl.BlockSpec((1, th), lambda j, i: (0, j + n_col_tiles)),
                ],
                out_specs=pl.BlockSpec((tm, th), lambda j, i: (i, j)),
            ),
            compiler_params=pltpu.CompilerParams(
                dimension_semantics=("parallel", "parallel"),
                vmem_limit_bytes=_VMEM_LIMIT_BYTES,
            ),
        )(x2d, x2d, b2d, b2d)
    else:
        # ---- fallback path: full-width feature block, ref-sliced in-kernel ----
        # per row (double-buffered): one (2H) input block + one (H) output block
        tm = _pick_row_tile(2 * 3 * h * itemsize, n_rows, 1, row_mult)
        grid = (_cdiv(n_rows, tm),)

        out = pl.pallas_call(
            _make_fullwidth_kernel(h, low_prec_gelu),
            out_shape=jax.ShapeDtypeStruct((n_rows, h), x.dtype),
            grid_spec=pltpu.PrefetchScalarGridSpec(
                num_scalar_prefetch=0,
                grid=grid,
                in_specs=[
                    pl.BlockSpec((tm, two_h), lambda i: (i, 0)),
                    pl.BlockSpec((1, two_h), lambda i: (0, 0)),  # constant -> elided
                ],
                out_specs=pl.BlockSpec((tm, h), lambda i: (i, 0)),
            ),
            compiler_params=pltpu.CompilerParams(
                dimension_semantics=("parallel",),
                vmem_limit_bytes=_VMEM_LIMIT_BYTES,
            ),
        )(x2d, b2d)

    return out.reshape(*lead, h)


def _reference_bias_geglu(x, bias):
    y = x.astype(jnp.float32) + bias.astype(jnp.float32)
    y1, y2 = jnp.split(y, 2, axis=-1)
    return (jax.nn.gelu(y1, approximate=True) * y2).astype(x.dtype)


if __name__ == "__main__":
    key = jax.random.PRNGKey(0)
    keys = jax.random.split(key, 8)

    # 1) Small shape from the test spec (full-width fallback path, H=32).
    batch, seq, hidden = 2, 8, 32
    x = jax.random.normal(keys[0], (batch, seq, 2 * hidden), dtype=jnp.float32)
    bias = jax.random.normal(keys[1], (2 * hidden,), dtype=jnp.float32)
    out = jax.block_until_ready(fused_bias_geglu(x, bias))
    ref = _reference_bias_geglu(x, bias)
    assert out.shape == (batch, seq, hidden), out.shape
    assert jnp.allclose(out, ref, atol=1e-5, rtol=1e-5), "mismatch vs reference (H=32)"

    # 2) 128-aligned shape exercising the column-tiled main path (H=128).
    hidden2 = 128
    x2 = jax.random.normal(keys[2], (batch, seq, 2 * hidden2), dtype=jnp.float32)
    bias2 = jax.random.normal(keys[3], (2 * hidden2,), dtype=jnp.float32)
    out2 = jax.block_until_ready(fused_bias_geglu(x2, bias2))
    ref2 = _reference_bias_geglu(x2, bias2)
    assert out2.shape == (batch, seq, hidden2), out2.shape
    assert jnp.allclose(out2, ref2, atol=1e-5, rtol=1e-5), "mismatch vs reference (H=128)"

    # 3) Ragged row-block case (n_rows = 12 not a multiple of the row tile).
    x3 = jax.random.normal(keys[4], (2, 6, 2 * hidden2), dtype=jnp.float32)
    bias3 = jax.random.normal(keys[5], (2 * hidden2,), dtype=jnp.float32)
    out3 = jax.block_until_ready(fused_bias_geglu(x3, bias3))
    ref3 = _reference_bias_geglu(x3, bias3)
    assert out3.shape == (2, 6, hidden2), out3.shape
    assert jnp.allclose(out3, ref3, atol=1e-5, rtol=1e-5), "mismatch vs reference (ragged)"

    # 4) bf16 path (low-precision GELU on v6e/v7x, f32 GELU elsewhere).
    hidden4 = 256
    x4 = jax.random.normal(keys[6], (batch, seq, 2 * hidden4), dtype=jnp.bfloat16)
    bias4 = jax.random.normal(keys[7], (2 * hidden4,), dtype=jnp.bfloat16)
    out4 = jax.block_until_ready(fused_bias_geglu(x4, bias4))
    ref4 = _reference_bias_geglu(x4, bias4)
    assert out4.shape == (batch, seq, hidden4), out4.shape
    assert jnp.allclose(out4.astype(jnp.float32), ref4.astype(jnp.float32),
                        atol=1e-1, rtol=5e-2), "mismatch vs reference (bf16)"

    print("KERNEL_OK")
</pallas_src>

<mosaic_0001>
module attributes {stable_mosaic.version = 11 : i64} {
  func.func @kernel(%arg0: i32, %arg1: memref<8x64xf32, #tpu.memory_space<vmem>>, %arg2: memref<1x64xf32, #tpu.memory_space<vmem>>, %arg3: memref<8x32xf32, #tpu.memory_space<vmem>>) attributes {dimension_semantics = [#tpu.dimension_semantics<parallel>], iteration_bounds = array<i64: 2>, scalar_prefetch = 0 : i64, scratch_operands = 0 : i64, tpu.core_type = #tpu.core_type<tc>, window_params = [{transform_indices = @transform_0, window_bounds = array<i64: 8, 64>}, {pipeline_mode = #tpu.pipeline_mode<synchronous>, transform_indices = @transform_1, window_bounds = array<i64: 1, 64>}, {transform_indices = @transform_2, window_bounds = array<i64: 8, 32>}]} {
    %c0 = arith.constant 0 : index
    %c0_0 = arith.constant 0 : index
    %0 = vector.load %arg1[%c0, %c0_0] : memref<8x64xf32, #tpu.memory_space<vmem>>, vector<8x32xf32>
    %c0_1 = arith.constant 0 : index
    %c0_2 = arith.constant 0 : index
    %1 = vector.load %arg2[%c0_1, %c0_2] : memref<1x64xf32, #tpu.memory_space<vmem>>, vector<1x32xf32>
    %2 = vector.broadcast %1 : vector<1x32xf32> to vector<8x32xf32>
    %3 = arith.addf %0, %2 : vector<8x32xf32>
    %c0_3 = arith.constant 0 : index
    %c32 = arith.constant 32 : index
    %4 = vector.load %arg1[%c0_3, %c32] : memref<8x64xf32, #tpu.memory_space<vmem>>, vector<8x32xf32>
    %c0_4 = arith.constant 0 : index
    %c32_5 = arith.constant 32 : index
    %5 = vector.load %arg2[%c0_4, %c32_5] : memref<1x64xf32, #tpu.memory_space<vmem>>, vector<1x32xf32>
    %6 = vector.broadcast %5 : vector<1x32xf32> to vector<8x32xf32>
    %7 = arith.addf %4, %6 : vector<8x32xf32>
    %cst = arith.constant 4.471500e-02 : f32
    %8 = vector.broadcast %cst : f32 to vector<8x32xf32>
    %9 = arith.mulf %8, %3 : vector<8x32xf32>
    %10 = arith.mulf %9, %3 : vector<8x32xf32>
    %11 = arith.mulf %10, %3 : vector<8x32xf32>
    %12 = arith.addf %3, %11 : vector<8x32xf32>
    %cst_6 = arith.constant 0.797884583 : f32
    %13 = vector.broadcast %cst_6 : f32 to vector<8x32xf32>
    %14 = arith.mulf %13, %12 : vector<8x32xf32>
    %cst_7 = arith.constant 5.000000e-01 : f32
    %15 = vector.broadcast %cst_7 : f32 to vector<8x32xf32>
    %16 = arith.mulf %15, %3 : vector<8x32xf32>
    %17 = math.tanh %14 : vector<8x32xf32>
    %cst_8 = arith.constant 1.000000e+00 : f32
    %18 = vector.broadcast %cst_8 : f32 to vector<8x32xf32>
    %19 = arith.addf %18, %17 : vector<8x32xf32>
    %20 = arith.mulf %16, %19 : vector<8x32xf32>
    %21 = arith.mulf %20, %7 : vector<8x32xf32>
    %c0_9 = arith.constant 0 : index
    %c0_10 = arith.constant 0 : index
    %22 = vector.load %arg3[%c0_9, %c0_10] : memref<8x32xf32, #tpu.memory_space<vmem>>, vector<8x32xf32>
    tpu.vector_store %arg3[%c0_9, %c0_10], %21 {strides = array<i32>} : memref<8x32xf32, #tpu.memory_space<vmem>>, vector<8x32xf32>,
    return
  }
  func.func @transform_0(%arg0: i32) -> (i32, i32) {
    %c0_i32 = arith.constant 0 : i32
    %c0_i32_0 = arith.constant 0 : i32
    return %arg0, %c0_i32 : i32, i32
  }
  func.func @transform_1(%arg0: i32) -> (i32, i32) {
    %c0_i32 = arith.constant 0 : i32
    %c0_i32_0 = arith.constant 0 : i32
    %c0_i32_1 = arith.constant 0 : i32
    return %c0_i32, %c0_i32_0 : i32, i32
  }
  func.func @transform_2(%arg0: i32) -> (i32, i32) {
    %c0_i32 = arith.constant 0 : i32
    %c0_i32_0 = arith.constant 0 : i32
    return %arg0, %c0_i32 : i32, i32
  }
}

</mosaic_0001>

<llo_original>
// kernel: tpu_custom_call.1
$region0: #{tpu_custom_call.1}
  #allocation0 [shape = 'u32[]', space=smem, size = 0x4, offset = 0x4, fixed_abs, tag = 'smem constant byte address 0x4 - core index']
  #allocation1 [shape = 'u32[144,128]{1,0:T(1,128)}', space=vmem, size = 0x12000, scoped, tag = 'internal scratch']
  %s0 = inlined_call_operand.hbm [shape: f32[16,64], index: 0, kind: input, shape index: {}]
  %s1 = inlined_call_operand.vmem [shape: f32[1,64], index: 1, kind: input, shape index: {}]
  %s2 = inlined_call_operand.hbm [shape: f32[16,32], index: 2, kind: output, shape index: {}]
  %s3 = sld [smem:[#allocation0]]
  $region45: #{tpu_custom_call.1} parent=0
    _
  %s5 = ssub.s32 1, %s3
  %s6 = scalar_select 0, %s5, %s3
  $region1: #{tpu_custom_call.1} parent=0
    #allocation2 [shape = 'u8[8192]{0}', space=vmem, size = 0x2000, scoped, tag = 'input window, operand 0']
    #allocation3 [shape = 's32[2]{0}', space=sflag, size = 0x8, scoped, tag = 'scoped memory for tpu_custom_call.1']
    #allocation4 [shape = 's32[2]{0}', space=sflag, size = 0x8, scoped, tag = 'scoped memory for tpu_custom_call.1']
    #allocation5 [shape = 'u8[8192]{0}', space=vmem, size = 0x2000, scoped, tag = 'output window, operand 0']
    %7 = vsyncpa [#allocation3], 0
    %s8 = scalar_lea.sflag [#allocation3], 1
    %9 = vsyncpa %s8, 0
    %10 = vsyncpa [#allocation4], 0
    %s11 = scalar_lea.sflag [#allocation4], 1
    %12 = vsyncpa %s11, 0
    loop: start=0, step=1, limit=4
    $region2: #{tpu_custom_call.1} parent=1 // loop_pre_header
      _
    $region3: #{tpu_custom_call.1} parent=1 // loop_header
      %s14 = sphi 0, %s18
      %p15 = scmp.ge.s32.totalorder %s14, 4
      %s24 = sphi 0, %s26
      %s27 = sphi 0, %s24
      %s28 = sphi 0, %s27
      %s44 = sphi 0, %s28
      %s48 = sphi 0, %s48
      %s50 = sphi 0, %s48
      %s51 = sphi 0, %s50
      %s65 = sphi 0, %s51
      %s71 = sphi 0, %s73
      %s74 = sphi 0, %s71
      %s75 = sphi 0, %s74
      %s91 = sphi 0, %s75
    $region4: #{tpu_custom_call.1} parent=1 // loop_header_branch
      %17 = sbr.rel (%p15) target = $region8
    $region5: #{tpu_custom_call.1} parent=1 // loop_body
      %s19 = ssub.s32 %s14, 1
      %s20 = ssub.s32 %s14, 2
      %s21 = sadd.s32 %s14, 1
      %s22 = ssub.s32 %s14, %s21
      %p23 = scmp.eq.s32.totalorder %s22, 0
      %s25 = sadd.s32 %s24, 1
      %s26 = scalar_select %p23, %s24, %s25
      %p29 = pneg %p23
      %p30 = scmp.eq.s32.totalorder %s14, 1
      %p31 = por %p29, %p30
      %p32 = scmp.ne.s32.totalorder %s24, %s27
      %p33 = scmp.eq.s32.totalorder %s14, 0
      %p34 = por %p32, %p33
      %p35 = scmp.ne.s32.totalorder %s24, %s27
      %p36 = scmp.eq.s32.totalorder %s19, 1
      %p37 = por %p35, %p36
      %p38 = scmp.ne.s32.totalorder %s27, %s28
      %p39 = scmp.eq.s32.totalorder %s19, 0
      %p40 = por %p38, %p39
      %p41 = scmp.ne.s32.totalorder %s27, %s28
      %p42 = scmp.eq.s32.totalorder %s20, 1
      %p43 = por %p41, %p42
      %p45 = scmp.ne.s32.totalorder %s28, %s44
      %p46 = scmp.eq.s32.totalorder %s20, 0
      %p47 = por %p45, %p46
      %s49 = sadd.s32 %s48, 1
      %p52 = scmp.eq.s32.totalorder %s14, 1
      %p53 = scmp.ne.s32.totalorder %s48, %s50
      %p54 = scmp.eq.s32.totalorder %s14, 0
      %p55 = por %p53, %p54
      %p56 = scmp.ne.s32.totalorder %s48, %s50
      %p57 = scmp.eq.s32.totalorder %s19, 1
      %p58 = por %p56, %p57
      %p59 = scmp.ne.s32.totalorder %s50, %s51
      %p60 = scmp.eq.s32.totalorder %s19, 0
      %p61 = por %p59, %p60
      %p62 = scmp.ne.s32.totalorder %s50, %s51
      %p63 = scmp.eq.s32.totalorder %s20, 1
      %p64 = por %p62, %p63
      %p66 = scmp.ne.s32.totalorder %s51, %s65
      %p67 = scmp.eq.s32.totalorder %s20, 0
      %p68 = por %p66, %p67
      %s69 = ssub.s32 %s14, %s21
      %p70 = scmp.eq.s32.totalorder %s69, 0
      %s72 = sadd.s32 %s71, 1
      %s73 = scalar_select %p70, %s71, %s72
      %p76 = pneg %p70
      %p77 = scmp.eq.s32.totalorder %s14, 1
      %p78 = por %p76, %p77
      %p79 = scmp.ne.s32.totalorder %s71, %s74
      %p80 = scmp.eq.s32.totalorder %s14, 0
      %p81 = por %p79, %p80
      %p82 = scmp.ne.s32.totalorder %s71, %s74
      %p83 = scmp.eq.s32.totalorder %s19, 1
      %p84 = por %p82, %p83
      %p85 = scmp.ne.s32.totalorder %s74, %s75
      %p86 = scmp.eq.s32.totalorder %s19, 0
      %p87 = por %p85, %p86
      %p88 = scmp.ne.s32.totalorder %s74, %s75
      %p89 = scmp.eq.s32.totalorder %s20, 1
      %p90 = por %p88, %p89
      %p92 = scmp.ne.s32.totalorder %s75, %s91
      %p93 = scmp.eq.s32.totalorder %s20, 0
      %p94 = por %p92, %p93
      %p95 = scmp.le.s32.totalorder 1, %s14
      %p96 = scmp.lt.s32.totalorder %s14, 3
      %p97 = pnand %p95, %p96
      %p98 = pneg %p97
      // Predicated region
      $region9: #{tpu_custom_call.1} parent=5 // pred_check
        _
      $region10: #{tpu_custom_call.1} parent=5 // pred_check_branch
        %100 = sbr.rel (%p97) target = $region12
      $region11: #{tpu_custom_call.1} parent=5 // pred_region
        %s101 = ssub.s32 %s14, 1
        // Predicated region
        $region13: #{tpu_custom_call.1} parent=11 // pred_check
          %p102 = pneg %p61
        $region14: #{tpu_custom_call.1} parent=11 // pred_check_branch
          %104 = sbr.rel (%p102) target = $region16
        $region15: #{tpu_custom_call.1} parent=11 // pred_region
          _
        $region16: #{tpu_custom_call.1} parent=11 // pred_fallthru
          _
      $region12: #{tpu_custom_call.1} parent=5 // pred_fallthru
        _
      %p105 = scmp.lt.s32.totalorder %s14, 2
      // Predicated region
      $region17: #{tpu_custom_call.1} parent=5 // pred_check
        %p106 = pneg %p105
      $region18: #{tpu_custom_call.1} parent=5 // pred_check_branch
        %108 = sbr.rel (%p106) target = $region20
      $region19: #{tpu_custom_call.1} parent=5 // pred_region
        // Predicated region
        $region21: #{tpu_custom_call.1} parent=19 // pred_check
          %p109 = pneg %p34
        $region22: #{tpu_custom_call.1} parent=19 // pred_check_branch
          %111 = sbr.rel (%p109) target = $region24
        $region23: #{tpu_custom_call.1} parent=19 // pred_region
          %s112 = sand.u32 %s24, 1
          %s113 = scalar_lea.sflag [#allocation3], %s112
          %s114 = sand.u32 %s24, 1
          %s115 = smul.addr %s114, 8
          %s116 = scalar_lea.vmem [#allocation2], %s115
          %s118 = ssub.s32 128, 128
          %119 = vsyncadd %s113, %s118
          %s120 = smul.addr %s14, 128
          %s121 = scalar_lea.hbm %s0, %s120
          %s123 = sshll.u32 %s116, 4
          %s124 = int_to_ptr.vmem [resolvable:$true] %s123
          %126 = dma.hbm_to_vmem [thread:$0]  %s121, 128, %s124, %s113
        $region24: #{tpu_custom_call.1} parent=19 // pred_fallthru
          _
      $region20: #{tpu_custom_call.1} parent=5 // pred_fallthru
        _
      %p127 = scmp.le.s32.totalorder 1, %s14
      %p128 = scmp.lt.s32.totalorder %s14, 3
      %p129 = pnand %p127, %p128
      %p130 = pneg %p129
      // Predicated region
      $region25: #{tpu_custom_call.1} parent=5 // pred_check
        _
      $region26: #{tpu_custom_call.1} parent=5 // pred_check_branch
        %132 = sbr.rel (%p129) target = $region28
      $region27: #{tpu_custom_call.1} parent=5 // pred_region
        %s133 = ssub.s32 %s14, 1
        %s134 = sand.u32 %s27, 1
        %s135 = scalar_lea.sflag [#allocation3], %s134
        %s136 = sand.u32 %s27, 1
        %s137 = smul.addr %s136, 8
        %s138 = scalar_lea.vmem [#allocation2], %s137
        // Predicated region
        $region29: #{tpu_custom_call.1} parent=27 // pred_check
          %p139 = pneg %p40
        $region30: #{tpu_custom_call.1} parent=27 // pred_check_branch
          %141 = sbr.rel (%p139) target = $region32
        $region31: #{tpu_custom_call.1} parent=27 // pred_region
          %142 = dma.done %s135, 128
        $region32: #{tpu_custom_call.1} parent=27 // pred_fallthru
          _
        %s143 = sand.u32 %s27, 1
        %s144 = scalar_lea.sflag [#allocation3], %s143
        %s145 = sand.u32 %s27, 1
        %s146 = smul.addr %s145, 8
        %s147 = scalar_lea.vmem [#allocation2], %s146
        %p148 = pneg %p40
        %p149 = pneg %p37
        %p150 = pneg %p61
        %p151 = pneg %p58
        %p152 = pneg %p87
        %p153 = pneg %p84
        %s154 = sand.u32 %s74, 1
        %s155 = scalar_lea.sflag [#allocation4], %s154
        %s156 = sand.u32 %s74, 1
        %s157 = smul.addr %s156, 8
        %s158 = scalar_lea.vmem [#allocation5], %s157
        %v159 = vld [vmem:[%s138] sm:$0xff]
        %v160 = vld [vmem:[%s1] sm:$0x1]
        %v162 = vlaneseq
        %v163 = vshrl.u32 %v162, 7
        %v164 = vsub.s32 0, %v163
        %v165 = vrot.slane %v160, %v164
        %v167 = vadd.f32 %v159, %v165
        %v168 = vmul.f32 %v167, 0.044715
        %v169 = vmul.f32 %v168, %v167
        %v170 = vmul.f32 %v169, %v167
        %v171 = vadd.f32 %v167, %v170
        %v172 = vmul.f32 %v171, 0.7978846
        %v173 = vmul.f32 %v167, 0.5
        %v174 = vtanh.pop %v172
        %v175 = vadd.f32 %v174, 1.0
        %v176 = vmul.f32 %v173, %v175
        %178 = vrot.lane.b32.xlu0 %v167, 96
        %v179 = vpop.permute.xlu0 %178
        %v181 = vmul.f32 %v176, %v179
        %vm182 = vcmask 261120
        %183 = vst.msk [vmem:[%s158] sm:$0xff] %vm182, %v181
        %s184 = sand.u32 %s74, 1
        %s185 = scalar_lea.sflag [#allocation4], %s184
        %s186 = sand.u32 %s74, 1
        %s187 = smul.addr %s186, 8
        %s188 = scalar_lea.vmem [#allocation5], %s187
        // Predicated region
        $region33: #{tpu_custom_call.1} parent=27 // pred_check
          %p189 = pneg %p84
        $region34: #{tpu_custom_call.1} parent=27 // pred_check_branch
          %191 = sbr.rel (%p189) target = $region36
        $region35: #{tpu_custom_call.1} parent=27 // pred_region
          %s193 = ssub.s32 128, 128
          %194 = vsyncadd %s185, %s193
          %s195 = smul.addr %s19, 128
          %s196 = scalar_lea.hbm %s2, %s195
          %s198 = sshll.u32 %s188, 4
          %s199 = int_to_ptr.vmem [resolvable:$true] %s198
          %201 = dma.vmem_to_hbm [thread:$0]  %s199, 128, %s196, %s185
        $region36: #{tpu_custom_call.1} parent=27 // pred_fallthru
          _
      $region28: #{tpu_custom_call.1} parent=5 // pred_fallthru
        _
      %p202 = scmp.le.s32.totalorder 2, %s14
      // Predicated region
      $region37: #{tpu_custom_call.1} parent=5 // pred_check
        %p203 = pneg %p202
      $region38: #{tpu_custom_call.1} parent=5 // pred_check_branch
        %205 = sbr.rel (%p203) target = $region40
      $region39: #{tpu_custom_call.1} parent=5 // pred_region
        %s206 = ssub.s32 %s14, 2
        // Predicated region
        $region41: #{tpu_custom_call.1} parent=39 // pred_check
          %p207 = pneg %p90
        $region42: #{tpu_custom_call.1} parent=39 // pred_check_branch
          %209 = sbr.rel (%p207) target = $region44
        $region43: #{tpu_custom_call.1} parent=39 // pred_region
          %s210 = sand.u32 %s75, 1
          %s211 = scalar_lea.sflag [#allocation4], %s210
          %s212 = sand.u32 %s75, 1
          %s213 = smul.addr %s212, 8
          %s214 = scalar_lea.vmem [#allocation5], %s213
          %215 = dma.done %s211, 128
        $region44: #{tpu_custom_call.1} parent=39 // pred_fallthru
          _
      $region40: #{tpu_custom_call.1} parent=5 // pred_fallthru
        _
    $region6: #{tpu_custom_call.1} parent=1 // loop_footer
      %s18 = sadd.s32 1, %s14
    $region7: #{tpu_custom_call.1} parent=1 // loop_footer_branch
      %13 = sbr.rel target = $region3
    $region8: #{tpu_custom_call.1} parent=1 // loop_exit
      _
    %216 = vsyncpa [#allocation3], 1
    %s217 = scalar_lea.sflag [#allocation3], 1
    %218 = vsyncpa %s217, 1
    %219 = vsyncpa [#allocation4], 1
    %s220 = scalar_lea.sflag [#allocation4], 1
    %221 = vsyncpa %s220, 1

</llo_original>
